<compile_context>
chip_gen: v7x
topology: tpu7x:2x2x1
jax: 0.10.0
libtpu: 0.0.40
codegen_flags: <defaults>
</compile_context>

<pallas_src>
import functools

import jax
import jax.numpy as jnp
from jax import lax
from jax.experimental import pallas as pl
from jax.experimental.pallas import tpu as pltpu


def _mlp_kernel_vec_out(x_ref, w1_ref, b1_ref, w3_ref, b3_ref, o_ref):
    """Fused MLP, num_outputs == 1 path (linear3 on VPU/XLU, bias in SMEM)."""
    # linear1: [TB, I] . [H1, I] contracted on I -> [TB, H1]   (MXU, f32 acc)
    h = lax.dot_general(
        x_ref[...], w1_ref[...],
        dimension_numbers=(((1,), (1,)), ((), ())),
        preferred_element_type=jnp.float32)
    # hidden1 (== hidden2: ReLU is idempotent)
    h = jnp.maximum(h + b1_ref[...], 0.0)
    # linear3 with a single output column: VPU multiply + lane reduce (XLU).
    # w3_ref is the PyTorch [1, H2] weight row; b3 is an SMEM scalar.
    out = jnp.sum(h * w3_ref[...], axis=-1, keepdims=True) + b3_ref[0]
    o_ref[...] = out.astype(o_ref.dtype)


def _mlp_kernel_mxu_out(x_ref, w1_ref, b1_ref, w3_ref, b3_ref, o_ref):
    """Fused MLP, general num_outputs > 1 path (both matmuls on the MXU)."""
    h = lax.dot_general(
        x_ref[...], w1_ref[...],
        dimension_numbers=(((1,), (1,)), ((), ())),
        preferred_element_type=jnp.float32)
    h = jnp.maximum(h + b1_ref[...], 0.0)
    out = lax.dot_general(
        h, w3_ref[...],
        dimension_numbers=(((1,), (1,)), ((), ())),
        preferred_element_type=jnp.float32)
    o_ref[...] = (out + b3_ref[...]).astype(o_ref.dtype)


def prepare_params(w1, b1, w3, b3):
    """One-time parameter prep (call once, NOT per forward).

    Weights keep the PyTorch [out, in] layout (no transpose needed).  Only the
    biases are re-laid-out: b1 -> [1, H1] VMEM row; b3 -> [1] SMEM scalar when
    num_outputs == 1, else [1, O] VMEM row.
    """
    num_outputs = w3.shape[0]
    b1_row = b1.reshape(1, -1)
    b3_prep = b3.reshape(1,) if num_outputs == 1 else b3.reshape(1, -1)
    return w1, b1_row, w3, b3_prep


@functools.partial(jax.jit, static_argnames=("block_b",))
def mlp_forward(x, w1, b1_row, w3, b3_prep, *, block_b=256):
    """x: [B, I]; w1: [H1, I]; b1_row: [1, H1]; w3: [O, H2]; b3_prep: [1] or [1, O]."""
    B, num_inputs = x.shape
    num_hidden1 = w1.shape[0]
    num_outputs, num_hidden2 = w3.shape

    # Batch tile: either the whole (small) batch, or 256-row tiles that fill
    # the MXU M dimension and let Pallas double-buffer x against compute.
    tb = min(block_b, B)
    grid = (pl.cdiv(B, tb),)

    resident = lambda shape: pl.BlockSpec(shape, lambda i: (0, 0))  # VMEM-resident

    if num_outputs == 1:
        kernel = _mlp_kernel_vec_out
        b3_spec = pl.BlockSpec(memory_space=pltpu.MemorySpace.SMEM)  # scalar bias
    else:
        kernel = _mlp_kernel_mxu_out
        b3_spec = resident((1, num_outputs))

    return pl.pallas_call(
        kernel,
        out_shape=jax.ShapeDtypeStruct((B, num_outputs), x.dtype),
        grid=grid,
        in_specs=[
            pl.BlockSpec((tb, num_inputs), lambda i: (i, 0)),   # x tile per step
            resident((num_hidden1, num_inputs)),                # w1 (PyTorch layout)
            resident((1, num_hidden1)),                         # b1 row
            resident((num_outputs, num_hidden2)),               # w3 (PyTorch layout)
            b3_spec,                                            # b3
        ],
        out_specs=pl.BlockSpec((tb, num_outputs), lambda i: (i, 0)),
        compiler_params=pltpu.CompilerParams(
            dimension_semantics=("parallel",)),                 # shard batch over TCs
    )(x, w1, b1_row, w3, b3_prep)


def reference_forward(x, w1, b1, w3, b3):
    h = jnp.maximum(x @ w1.T + b1, 0.0)  # hidden1; hidden2's ReLU is a no-op
    return h @ w3.T + b3


def _make_params(key, num_inputs, num_hidden1, num_hidden2, num_outputs):
    """PyTorch nn.Linear-style init: weight [out, in], bias [out]."""
    k1w, k1b, k3w, k3b = jax.random.split(key, 4)
    bound1 = 1.0 / jnp.sqrt(num_inputs)
    w1 = jax.random.uniform(k1w, (num_hidden1, num_inputs), jnp.float32, -bound1, bound1)
    b1 = jax.random.uniform(k1b, (num_hidden1,), jnp.float32, -bound1, bound1)
    bound3 = 1.0 / jnp.sqrt(num_hidden2)
    w3 = jax.random.uniform(k3w, (num_outputs, num_hidden2), jnp.float32, -bound3, bound3)
    b3 = jax.random.uniform(k3b, (num_outputs,), jnp.float32, -bound3, bound3)
    return w1, b1, w3, b3


if __name__ == "__main__":
    key = jax.random.PRNGKey(0)
    kp1, kx1, kp2, kx2 = jax.random.split(key, 4)

    # --- Boston-housing configuration: 13 inputs, hidden 32/32, 1 output -----
    num_inputs, num_hidden1, num_hidden2, num_outputs = 13, 32, 32, 1
    batch = 8
    w1, b1, w3, b3 = _make_params(kp1, num_inputs, num_hidden1, num_hidden2, num_outputs)
    x = jax.random.normal(kx1, (batch, num_inputs), dtype=jnp.float32)

    w1_p, b1_row, w3_p, b3_p = prepare_params(w1, b1, w3, b3)   # one-time layout prep
    out = jax.block_until_ready(mlp_forward(x, w1_p, b1_row, w3_p, b3_p))
    ref = reference_forward(x, w1, b1, w3, b3)
    assert out.shape == (batch, num_outputs)
    assert jnp.allclose(out, ref, atol=1e-5, rtol=1e-5), "mismatch vs reference (O=1)"

    # --- General multi-output configuration (exercises the MXU output path) --
    o2 = 4
    w1b, b1b, w3b, b3b = _make_params(kp2, num_inputs, num_hidden1, num_hidden2, o2)
    x2 = jax.random.normal(kx2, (batch, num_inputs), dtype=jnp.float32)
    w1b_p, b1b_row, w3b_p, b3b_p = prepare_params(w1b, b1b, w3b, b3b)
    out2 = jax.block_until_ready(mlp_forward(x2, w1b_p, b1b_row, w3b_p, b3b_p))
    ref2 = reference_forward(x2, w1b, b1b, w3b, b3b)
    assert out2.shape == (batch, o2)
    assert jnp.allclose(out2, ref2, atol=1e-5, rtol=1e-5), "mismatch vs reference (O>1)"

    print("KERNEL_OK")
</pallas_src>

<mosaic_0001>
module attributes {stable_mosaic.version = 11 : i64} {
  func.func @_mlp_kernel_vec_out(%arg0: i32, %arg1: memref<8x13xf32, #tpu.memory_space<vmem>>, %arg2: memref<32x13xf32, #tpu.memory_space<vmem>>, %arg3: memref<1x32xf32, #tpu.memory_space<vmem>>, %arg4: memref<1x32xf32, #tpu.memory_space<vmem>>, %arg5: memref<1xf32, #tpu.memory_space<smem>>, %arg6: memref<8x1xf32, #tpu.memory_space<vmem>>) attributes {dimension_semantics = [#tpu.dimension_semantics<parallel>], iteration_bounds = array<i64: 1>, scalar_prefetch = 0 : i64, scratch_operands = 0 : i64, tpu.core_type = #tpu.core_type<tc>, window_params = [{transform_indices = @transform_0, window_bounds = array<i64: 8, 13>}, {pipeline_mode = #tpu.pipeline_mode<synchronous>, transform_indices = @transform_1, window_bounds = array<i64: 32, 13>}, {pipeline_mode = #tpu.pipeline_mode<synchronous>, transform_indices = @transform_2, window_bounds = array<i64: 1, 32>}, {pipeline_mode = #tpu.pipeline_mode<synchronous>, transform_indices = @transform_3, window_bounds = array<i64: 1, 32>}, {transform_indices = @transform_4, window_bounds = array<i64: 1>}, {transform_indices = @transform_5, window_bounds = array<i64: 8, 1>}]} {
    %c0 = arith.constant 0 : index
    %c0_0 = arith.constant 0 : index
    %0 = vector.load %arg1[%c0, %c0_0] : memref<8x13xf32, #tpu.memory_space<vmem>>, vector<8x13xf32>
    %c0_1 = arith.constant 0 : index
    %c0_2 = arith.constant 0 : index
    %1 = vector.load %arg2[%c0_1, %c0_2] : memref<32x13xf32, #tpu.memory_space<vmem>>, vector<32x13xf32>
    %cst = arith.constant dense<0.000000e+00> : vector<8x32xf32>
    %2 = tpu.matmul %0, %1, %cst {dimension_numbers = #tpu.dot_dimension_numbers<[1], [1], [0], [0], [0, 0, 1, 0], [], []>} : vector<8x13xf32>, vector<32x13xf32>, vector<8x32xf32> -> vector<8x32xf32>
    %c0_3 = arith.constant 0 : index
    %c0_4 = arith.constant 0 : index
    %3 = vector.load %arg3[%c0_3, %c0_4] : memref<1x32xf32, #tpu.memory_space<vmem>>, vector<1x32xf32>
    %4 = vector.broadcast %3 : vector<1x32xf32> to vector<8x32xf32>
    %5 = arith.addf %2, %4 : vector<8x32xf32>
    %cst_5 = arith.constant 0.000000e+00 : f32
    %6 = vector.broadcast %cst_5 : f32 to vector<8x32xf32>
    %7 = arith.maximumf %5, %6 : vector<8x32xf32>
    %c0_6 = arith.constant 0 : index
    %c0_7 = arith.constant 0 : index
    %8 = vector.load %arg4[%c0_6, %c0_7] : memref<1x32xf32, #tpu.memory_space<vmem>>, vector<1x32xf32>
    %9 = vector.broadcast %8 : vector<1x32xf32> to vector<8x32xf32>
    %10 = arith.mulf %7, %9 : vector<8x32xf32>
    %cst_8 = arith.constant dense<0.000000e+00> : vector<8xf32>
    %11 = vector.multi_reduction <add>, %10, %cst_8 [1] : vector<8x32xf32> to vector<8xf32>
    %12 = vector.shape_cast %11 : vector<8xf32> to vector<8x1xf32>
    %c0_9 = arith.constant 0 : index
    %13 = memref.load %arg5[%c0_9] : memref<1xf32, #tpu.memory_space<smem>>
    %14 = vector.broadcast %13 : f32 to vector<8x1xf32>
    %15 = arith.addf %12, %14 : vector<8x1xf32>
    %c0_10 = arith.constant 0 : index
    %c0_11 = arith.constant 0 : index
    %16 = vector.load %arg6[%c0_10, %c0_11] : memref<8x1xf32, #tpu.memory_space<vmem>>, vector<8x1xf32>
    tpu.vector_store %arg6[%c0_10, %c0_11], %15 {strides = array<i32>} : memref<8x1xf32, #tpu.memory_space<vmem>>, vector<8x1xf32>,
    return
  }
  func.func @transform_0(%arg0: i32) -> (i32, i32) {
    %c0_i32 = arith.constant 0 : i32
    %c0_i32_0 = arith.constant 0 : i32
    return %arg0, %c0_i32 : i32, i32
  }
  func.func @transform_1(%arg0: i32) -> (i32, i32) {
    %c0_i32 = arith.constant 0 : i32
    %c0_i32_0 = arith.constant 0 : i32
    %c0_i32_1 = arith.constant 0 : i32
    return %c0_i32, %c0_i32_0 : i32, i32
  }
  func.func @transform_2(%arg0: i32) -> (i32, i32) {
    %c0_i32 = arith.constant 0 : i32
    %c0_i32_0 = arith.constant 0 : i32
    %c0_i32_1 = arith.constant 0 : i32
    return %c0_i32, %c0_i32_0 : i32, i32
  }
  func.func @transform_3(%arg0: i32) -> (i32, i32) {
    %c0_i32 = arith.constant 0 : i32
    %c0_i32_0 = arith.constant 0 : i32
    %c0_i32_1 = arith.constant 0 : i32
    return %c0_i32, %c0_i32_0 : i32, i32
  }
  func.func @transform_4(%arg0: i32) -> i32 {
    %c0_i32 = arith.constant 0 : i32
    %c0_i32_0 = arith.constant 0 : i32
    return %c0_i32 : i32
  }
  func.func @transform_5(%arg0: i32) -> (i32, i32) {
    %c0_i32 = arith.constant 0 : i32
    %c0_i32_0 = arith.constant 0 : i32
    return %arg0, %c0_i32 : i32, i32
  }
}

</mosaic_0001>

<llo_original>
// kernel: mlp_forward.1
$region0: #{mlp_forward.1}
  #allocation0 [shape = 'u32[]', space=smem, size = 0x4, offset = 0x4, fixed_abs, tag = 'smem constant byte address 0x4 - core index']
  #allocation1 [shape = 'u32[144,128]{1,0:T(1,128)}', space=vmem, size = 0x12000, scoped, tag = 'internal scratch']
  #allocation2 [shape = 'f32[1]{0:T(128)S(6)}', space=smem, size = 0x200, scoped, tag = 'scoped memory for mlp_forward.1']
  %s0 = inlined_call_operand.vmem [shape: f32[8,13], index: 0, kind: input, shape index: {}]
  %s1 = inlined_call_operand.vmem [shape: f32[32,13], index: 1, kind: input, shape index: {}]
  %s2 = inlined_call_operand.vmem [shape: f32[1,32], index: 2, kind: input, shape index: {}]
  %s3 = inlined_call_operand.vmem [shape: f32[1,32], index: 3, kind: input, shape index: {}]
  %s4 = inlined_call_operand.<no memory space> [shape: f32[1], index: 4, kind: input, shape index: {}]
  %s5 = inlined_call_operand.vmem [shape: f32[8,1], index: 5, kind: output, shape index: {}]
  %s6 = sld [smem:[#allocation0]]
  $region30: #{mlp_forward.1} parent=0
    _
  %s8 = ssub.s32 1, %s6
  %s9 = scalar_select 0, %s8, %s6
  %10 = sst [smem:[#allocation2]] %s4
  // Predicated region
  $region2: #{mlp_forward.1} parent=0 // pred_check
    _
  $region3: #{mlp_forward.1} parent=0 // pred_check_branch
    %12 = sbr.rel (0) target = $region5
  $region4: #{mlp_forward.1} parent=0 // pred_region
    _
  $region5: #{mlp_forward.1} parent=0 // pred_fallthru
    _
  // Predicated region
  $region6: #{mlp_forward.1} parent=0 // pred_check
    _
  $region7: #{mlp_forward.1} parent=0 // pred_check_branch
    %14 = sbr.rel (0) target = $region9
  $region8: #{mlp_forward.1} parent=0 // pred_region
    _
  $region9: #{mlp_forward.1} parent=0 // pred_fallthru
    _
  // Predicated region
  $region10: #{mlp_forward.1} parent=0 // pred_check
    _
  $region11: #{mlp_forward.1} parent=0 // pred_check_branch
    %16 = sbr.rel (0) target = $region13
  $region12: #{mlp_forward.1} parent=0 // pred_region
    _
  $region13: #{mlp_forward.1} parent=0 // pred_fallthru
    _
  // Predicated region
  $region14: #{mlp_forward.1} parent=0 // pred_check
    _
  $region15: #{mlp_forward.1} parent=0 // pred_check_branch
    %18 = sbr.rel (0) target = $region17
  $region16: #{mlp_forward.1} parent=0 // pred_region
    _
  $region17: #{mlp_forward.1} parent=0 // pred_fallthru
    _
  // Predicated region
  $region18: #{mlp_forward.1} parent=0 // pred_check
    _
  $region19: #{mlp_forward.1} parent=0 // pred_check_branch
    %20 = sbr.rel (0) target = $region21
  $region20: #{mlp_forward.1} parent=0 // pred_region
    _
  $region21: #{mlp_forward.1} parent=0 // pred_fallthru
    _
  %v21 = vld [vmem:[%s0] sm:$0xff]
  %v22 = vld [vmem:[%s1] sm:$0xff]
  %v23 = vld [vmem:[%s1 + $0x8] sm:$0xff]
  %v24 = vld [vmem:[%s1 + $0x10] sm:$0xff]
  %v25 = vld [vmem:[%s1 + $0x18] sm:$0xff]
  %v26 = vld [vmem:[%s2] sm:$0x1]
  %v28 = vlaneseq
  %v29 = vshrl.u32 %v28, 7
  %v30 = vsub.s32 0, %v29
  %v31 = vrot.slane %v26, %v30
  %vm33 = vcmask 105472
  %v35 = vsel %vm33, %v21, 0
  %v38 = vsel %vm33, %v22, 0
  %v41 = vsel %vm33, %v23, 0
  %v44 = vsel %vm33, %v24, 0
  %v47 = vsel %vm33, %v25, 0
  %49 = vmatprep.subr.mxu0 0.0
  %50 = vmatpush1.xpose.msra.mxu0 %v38
  %51 = vmatprep.subr.mxu0 0.0
  %52 = vmatpush1.xpose.msra.mxu0 %v41
  %53 = vmatprep.subr.mxu0 0.0
  %54 = vmatpush1.xpose.msra.mxu0 %v44
  %55 = vmatprep.subr.mxu0 0.0
  %56 = vmatpush1.xpose.msra.mxu0 %v47
  %57 = vmatprep.subr.mxu0 0.0
  %58 = vmatpush1.xpose.msra.mxu0 0.0
  %59 = vmatprep.subr.mxu0 0.0
  %60 = vmatpush1.xpose.msra.mxu0 0.0
  %61 = vmatprep.subr.mxu0 0.0
  %62 = vmatpush1.xpose.msra.mxu0 0.0
  %63 = vmatprep.subr.mxu0 0.0
  %64 = vmatpush1.xpose.msra.mxu0 0.0
  %65 = vmatprep.subr.mxu0 0.0
  %66 = vmatpush1.xpose.msra.mxu0 0.0
  %67 = vmatprep.subr.mxu0 0.0
  %68 = vmatpush1.xpose.msra.mxu0 0.0
  %69 = vmatprep.subr.mxu0 0.0
  %70 = vmatpush1.xpose.msra.mxu0 0.0
  %71 = vmatprep.subr.mxu0 0.0
  %72 = vmatpush1.xpose.msra.mxu0 0.0
  %73 = vmatprep.subr.mxu0 0.0
  %74 = vmatpush1.xpose.msra.mxu0 0.0
  %75 = vmatprep.subr.mxu0 0.0
  %76 = vmatpush1.xpose.msra.mxu0 0.0
  %77 = vmatprep.subr.mxu0 0.0
  %78 = vmatpush1.xpose.msra.mxu0 0.0
  %79 = vmatprep.subr.mxu0 0.0
  %80 = vmatpush1.xpose.msra.mxu0 0.0
  %81 = vmatprep.subr.mxu0 0.0
  %82 = vmatpush1.xpose.msra.mxu0 0.0
  %83 = vmatprep.subr.mxu0 0.0
  %84 = vmatpush1.xpose.msra.mxu0 0.0
  %85 = vmatprep.subr.mxu0 0.0
  %86 = vmatpush1.xpose.msra.mxu0 0.0
  %87 = vmatprep.subr.mxu0 0.0
  %88 = vmatpush1.xpose.msra.mxu0 0.0
  %89 = vmatprep.subr.mxu0 0.0
  %90 = vmatpush1.xpose.msra.mxu0 0.0
  %91 = vmatprep.subr.mxu0 0.0
  %92 = vmatpush1.xpose.msra.mxu0 0.0
  %93 = vmatprep.subr.mxu0 0.0
  %94 = vmatpush1.xpose.msra.mxu0 0.0
  %95 = vmatprep.subr.mxu0 0.0
  %96 = vmatpush1.xpose.msra.mxu0 0.0
  %97 = vmatprep.subr.mxu0 0.0
  %98 = vmatpush1.xpose.msra.mxu0 0.0
  %99 = vmatprep.subr.mxu0 0.0
  %100 = vmatpush1.xpose.msra.mxu0 0.0
  %101 = vmatprep.subr.mxu0 0.0
  %102 = vmatpush1.xpose.msra.mxu0 0.0
  %103 = vmatprep.subr.mxu0 0.0
  %104 = vmatpush1.xpose.msra.mxu0 0.0
  %105 = vmatprep.subr.mxu0 0.0
  %106 = vmatpush1.xpose.msra.mxu0 0.0
  %107 = vmatprep.subr.mxu0 0.0
  %108 = vmatpush1.xpose.msra.mxu0 0.0
  %109 = vmatprep.subr.mxu0 0.0
  %110 = vmatpush1.xpose.msra.mxu0 0.0
  %111 = vmatprep.subr.mxu0 0.0
  %112 = vmatpush1.xpose.msra.mxu0 0.0
  %113 = vmatprep.mubr.f32.mxu0 0.0
  %114 = vmatmul.mubr.f32.gmra.mrb[0].mxu0 %v35
  %v115 = vpop.f32.mrb[0].mxu0
  %v116 = vadd.f32 %v31, %v115
  %v117 = vpop.f32.mrb[0].mxu0
  %118 = vdwg.mxu0
  %v119 = vmax.f32 %v116, 0.0
  %v120 = vld [vmem:[%s3] sm:$0x1]
  %v122 = vlaneseq
  %v123 = vshrl.u32 %v122, 7
  %v124 = vsub.s32 0, %v123
  %v125 = vrot.slane %v120, %v124
  %v127 = vmul.f32 %v119, %v125
  %vm128 = vcmask 261120
  %v129 = vsel %vm128, %v127, 0.0
  %130 = vadd.xlane.f32.xlu0 %v129
  %v131 = vpop.xlane.xlu0 %130
  %s132 = sld [smem:[#allocation2]]
  %v133 = vstv %s132
  %v134 = vadd.f32 %v131, %v133
  %vm135 = vcmask 7168
  %136 = vst.msk [vmem:[%s5] sm:$0xff] %vm135, %v134
  // Predicated region
  $region22: #{mlp_forward.1} parent=0 // pred_check
    _
  $region23: #{mlp_forward.1} parent=0 // pred_check_branch
    %138 = sbr.rel (0) target = $region25
  $region24: #{mlp_forward.1} parent=0 // pred_region
    _
  $region25: #{mlp_forward.1} parent=0 // pred_fallthru
    _
  // Predicated region
  $region26: #{mlp_forward.1} parent=0 // pred_check
    _
  $region27: #{mlp_forward.1} parent=0 // pred_check_branch
    %140 = sbr.rel (0) target = $region29
  $region28: #{mlp_forward.1} parent=0 // pred_region
    _
  $region29: #{mlp_forward.1} parent=0 // pred_fallthru
    _

</llo_original>
